<compile_context>
chip_gen: v7x
topology: tpu7x:2x2x1
jax: 0.10.0
libtpu: 0.0.40
codegen_flags: <defaults>
</compile_context>

<pallas_src>
from typing import NamedTuple, Tuple

import jax
import jax.numpy as jnp
from jax.experimental import pallas as pl
from jax.experimental.pallas import tpu as pltpu

SUBLANE = 8    # f32 sublane tile: batch rows / slab row-offsets aligned to this
LANE = 128     # lane width: large batch tiles snapped to multiples of this


def _align(n: int, m: int) -> int:
    return pl.cdiv(n, m) * m


class PackedMLP(NamedTuple):
    """All MLP weights/biases packed into one resident, sublane-aligned slab."""
    slab: jax.Array                  # [R, C] f32; every part starts on an 8-row boundary
    in_dim: int                      # sum(input_sizes), unpadded
    in_dim_padded: int               # sublane-aligned feature width the kernel expects
    out_dim: int                     # out_n
    layer_specs: Tuple[Tuple[int, int, int, int], ...]  # (w_off, k_rows, b_off, d_out)


def pack_params(params) -> PackedMLP:
    """One-time weight preprocessing (hoisted out of the forward path).

    `params` is a list of (W, b) with W:[in, out] and b:[1, out] (or [out]).
    num_layers-1 hidden Linear+ReLU blocks followed by a final Linear head.
    """
    assert len(params) >= 1
    cols = max(int(w.shape[1]) for w, _ in params)
    in_dim = int(params[0][0].shape[0])
    in_dim_padded = _align(in_dim, SUBLANE)

    parts = []
    layer_specs = []
    off = 0
    for idx, (w, b) in enumerate(params):
        w = jnp.asarray(w, jnp.float32)
        b = jnp.asarray(b, jnp.float32).reshape(1, -1)
        k, d_out = int(w.shape[0]), int(w.shape[1])
        # Rows the kernel will actually slice/multiply with for this layer.
        k_rows = in_dim_padded if idx == 0 else k
        k_pad = _align(k_rows, SUBLANE)
        parts.append(jnp.pad(w, ((0, k_pad - k), (0, cols - d_out))))
        parts.append(jnp.pad(b, ((0, SUBLANE - 1), (0, cols - d_out))))
        w_off = off
        off += k_pad
        b_off = off
        off += SUBLANE
        layer_specs.append((w_off, k_rows, b_off, d_out))

    slab = jnp.concatenate(parts, axis=0)
    return PackedMLP(slab, in_dim, in_dim_padded,
                     layer_specs[-1][-1], tuple(layer_specs))


def _make_mlp_kernel(layer_specs):
    """relu(x@W1+b1) -> relu(.@W2+b2) -> ... -> .@Wn+bn (no final activation)."""
    n_layers = len(layer_specs)

    def kernel(x_ref, slab_ref, o_ref):
        h = x_ref[...]
        for l, (w_off, k, b_off, d_out) in enumerate(layer_specs):
            w = slab_ref[w_off:w_off + k, :d_out]      # static, 8-row-aligned slice
            b = slab_ref[b_off:b_off + 1, :d_out]
            h = jnp.dot(h, w, preferred_element_type=jnp.float32) + b
            if l < n_layers - 1:
                h = jnp.maximum(h, 0.0)                # ReLU on hidden layers only
        o_ref[...] = h.astype(o_ref.dtype)

    return kernel


def _choose_bm(batch: int, block_m: int) -> int:
    """Pick the batch-tile size: big (default up to 512), sublane-aligned, and
    guaranteeing >= 2 grid steps when possible so v7x's 2 TCs both get work."""
    rows = _align(batch, SUBLANE)
    if rows < 2 * SUBLANE:
        return rows                                    # tiny batch: one tile
    half = _align(pl.cdiv(rows, 2), SUBLANE)           # ensures grid >= 2
    bm = min(block_m, half)
    if bm >= LANE:                                     # keep big tiles on clean
        bm = (bm // LANE) * LANE                       # (8,128) boundaries
    return bm


def linear_cat_policy(inputs, packed: PackedMLP, *, block_m: int = 512):
    """LinearCatPolicy forward.  `inputs` is a tuple of [batch, d_i] arrays,
    `packed` comes from pack_params() (computed once, outside the hot path)."""
    batch = int(inputs[0].shape[0])
    dtype = inputs[0].dtype

    # Concatenate the inputs in the wrapper: at sum(d_i) ~= 32 this is cheaper
    # than one under-filled MXU matmul per input inside the kernel.
    # TODO(synk): for very large sum(d_i), fuse the concat back into the kernel
    # (per-input row-split of W1) to avoid materializing the concat in HBM.
    x = jnp.concatenate(inputs, axis=-1)
    if packed.in_dim_padded != packed.in_dim:
        x = jnp.pad(x, ((0, 0), (0, packed.in_dim_padded - packed.in_dim)))

    bm = _choose_bm(batch, block_m)
    padded_batch = _align(batch, bm)
    if padded_batch != batch:
        x = jnp.pad(x, ((0, padded_batch - batch), (0, 0)))
    grid = (padded_batch // bm,)

    slab_rows, slab_cols = packed.slab.shape

    out = pl.pallas_call(
        _make_mlp_kernel(packed.layer_specs),
        out_shape=jax.ShapeDtypeStruct((padded_batch, packed.out_dim), dtype),
        grid=grid,
        in_specs=[
            # Batch-tiled activations.
            pl.BlockSpec((bm, packed.in_dim_padded), lambda i: (i, 0)),
            # Single packed weight slab, resident in VMEM across all tiles.
            pl.BlockSpec((slab_rows, slab_cols), lambda i: (0, 0)),
        ],
        # Unpadded head: out_dim equals the full array dim (legal block shape),
        # keeps HBM writes at 32 B/row instead of 512 B/row.
        out_specs=pl.BlockSpec((bm, packed.out_dim), lambda i: (i, 0)),
        compiler_params=pltpu.CompilerParams(
            # Batch tiles are independent -> shard across TCs on v7x.
            dimension_semantics=("parallel",)),
    )(x, packed.slab)

    return out[:batch]


def init_params(key, inp_n, hidden_size, out_n, num_layers=3):
    """Deterministic init mimicking nn.Linear (uniform(-1/sqrt(fan_in), ...)).
    Weights stored as [in, out]; biases as [1, out]."""
    def lin(key, n_in, n_out):
        kw, kb = jax.random.split(key)
        bound = 1.0 / jnp.sqrt(jnp.float32(n_in))
        w = jax.random.uniform(kw, (n_in, n_out), jnp.float32, -bound, bound)
        b = jax.random.uniform(kb, (1, n_out), jnp.float32, -bound, bound)
        return w, b

    keys = jax.random.split(key, num_layers)
    params = []
    last = inp_n
    for i in range(num_layers - 1):
        params.append(lin(keys[i], last, hidden_size))
        last = hidden_size
    params.append(lin(keys[-1], last, out_n))
    return params


def reference(inputs, params):
    h = jnp.concatenate(inputs, axis=-1)
    n = len(params)
    for i, (w, b) in enumerate(params):
        h = h @ w + b.reshape(1, -1)
        if i < n - 1:
            h = jnp.maximum(h, 0.0)
    return h


if __name__ == "__main__":
    # LinearCatPolicy(input_sizes=(12, 20), out_n=8, hidden_size=32,
    #                 num_layers=3, activation_fn=nn.ReLU)
    input_sizes = (12, 20)
    inp_n = sum(input_sizes)
    hidden_size = 32
    out_n = 8

    key = jax.random.PRNGKey(0)
    k_x1, k_x2, k_p = jax.random.split(key, 3)
    params = init_params(k_p, inp_n, hidden_size, out_n, num_layers=3)
    packed = pack_params(params)                       # one-time weight prep

    ok = True
    for batch in (2, 200):                             # tiny (grid=1) and multi-tile
        kx1, kx2 = jax.random.split(jax.random.fold_in(k_x1, batch))
        x1 = jax.random.normal(kx1, (batch, input_sizes[0]), jnp.float32)
        x2 = jax.random.normal(kx2, (batch, input_sizes[1]), jnp.float32)

        out = linear_cat_policy((x1, x2), packed)
        out = jax.block_until_ready(out)
        ref = reference((x1, x2), params)

        ok &= out.shape == (batch, out_n)
        ok &= bool(jnp.allclose(out, ref, atol=1e-5, rtol=1e-5))

    assert ok
    print("KERNEL_OK")
</pallas_src>

<mosaic_0001>
module attributes {stable_mosaic.version = 11 : i64} {
  func.func @kernel(%arg0: i32, %arg1: memref<8x32xf32, #tpu.memory_space<vmem>>, %arg2: memref<120x32xf32, #tpu.memory_space<vmem>>, %arg3: memref<8x8xf32, #tpu.memory_space<vmem>>) attributes {dimension_semantics = [#tpu.dimension_semantics<parallel>], iteration_bounds = array<i64: 1>, scalar_prefetch = 0 : i64, scratch_operands = 0 : i64, tpu.core_type = #tpu.core_type<tc>, window_params = [{transform_indices = @transform_0, window_bounds = array<i64: 8, 32>}, {pipeline_mode = #tpu.pipeline_mode<synchronous>, transform_indices = @transform_1, window_bounds = array<i64: 120, 32>}, {transform_indices = @transform_2, window_bounds = array<i64: 8, 8>}]} {
    %c0 = arith.constant 0 : index
    %c0_0 = arith.constant 0 : index
    %0 = vector.load %arg1[%c0, %c0_0] : memref<8x32xf32, #tpu.memory_space<vmem>>, vector<8x32xf32>
    %c0_1 = arith.constant 0 : index
    %c0_2 = arith.constant 0 : index
    %1 = vector.load %arg2[%c0_1, %c0_2] : memref<120x32xf32, #tpu.memory_space<vmem>>, vector<32x32xf32>
    %c32 = arith.constant 32 : index
    %c0_3 = arith.constant 0 : index
    %2 = vector.load %arg2[%c32, %c0_3] : memref<120x32xf32, #tpu.memory_space<vmem>>, vector<1x32xf32>
    %cst = arith.constant dense<0.000000e+00> : vector<8x32xf32>
    %3 = tpu.matmul %0, %1, %cst {dimension_numbers = #tpu.dot_dimension_numbers<[1], [0], [0], [1], [0, 0, 1, 1], [], []>} : vector<8x32xf32>, vector<32x32xf32>, vector<8x32xf32> -> vector<8x32xf32>
    %4 = vector.broadcast %2 : vector<1x32xf32> to vector<8x32xf32>
    %5 = arith.addf %3, %4 : vector<8x32xf32>
    %cst_4 = arith.constant 0.000000e+00 : f32
    %6 = vector.broadcast %cst_4 : f32 to vector<8x32xf32>
    %7 = arith.maximumf %5, %6 : vector<8x32xf32>
    %c40 = arith.constant 40 : index
    %c0_5 = arith.constant 0 : index
    %8 = vector.load %arg2[%c40, %c0_5] : memref<120x32xf32, #tpu.memory_space<vmem>>, vector<32x32xf32>
    %c72 = arith.constant 72 : index
    %c0_6 = arith.constant 0 : index
    %9 = vector.load %arg2[%c72, %c0_6] : memref<120x32xf32, #tpu.memory_space<vmem>>, vector<1x32xf32>
    %cst_7 = arith.constant dense<0.000000e+00> : vector<8x32xf32>
    %10 = tpu.matmul %7, %8, %cst_7 {dimension_numbers = #tpu.dot_dimension_numbers<[1], [0], [0], [1], [0, 0, 1, 1], [], []>} : vector<8x32xf32>, vector<32x32xf32>, vector<8x32xf32> -> vector<8x32xf32>
    %11 = vector.broadcast %9 : vector<1x32xf32> to vector<8x32xf32>
    %12 = arith.addf %10, %11 : vector<8x32xf32>
    %cst_8 = arith.constant 0.000000e+00 : f32
    %13 = vector.broadcast %cst_8 : f32 to vector<8x32xf32>
    %14 = arith.maximumf %12, %13 : vector<8x32xf32>
    %c80 = arith.constant 80 : index
    %c0_9 = arith.constant 0 : index
    %15 = vector.load %arg2[%c80, %c0_9] : memref<120x32xf32, #tpu.memory_space<vmem>>, vector<32x8xf32>
    %c112 = arith.constant 112 : index
    %c0_10 = arith.constant 0 : index
    %16 = vector.load %arg2[%c112, %c0_10] : memref<120x32xf32, #tpu.memory_space<vmem>>, vector<1x8xf32>
    %cst_11 = arith.constant dense<0.000000e+00> : vector<8x8xf32>
    %17 = tpu.matmul %14, %15, %cst_11 {dimension_numbers = #tpu.dot_dimension_numbers<[1], [0], [0], [1], [0, 0, 1, 1], [], []>} : vector<8x32xf32>, vector<32x8xf32>, vector<8x8xf32> -> vector<8x8xf32>
    %18 = vector.broadcast %16 : vector<1x8xf32> to vector<8x8xf32>
    %19 = arith.addf %17, %18 : vector<8x8xf32>
    %c0_12 = arith.constant 0 : index
    %c0_13 = arith.constant 0 : index
    %20 = vector.load %arg3[%c0_12, %c0_13] : memref<8x8xf32, #tpu.memory_space<vmem>>, vector<8x8xf32>
    tpu.vector_store %arg3[%c0_12, %c0_13], %19 {strides = array<i32>} : memref<8x8xf32, #tpu.memory_space<vmem>>, vector<8x8xf32>,
    return
  }
  func.func @transform_0(%arg0: i32) -> (i32, i32) {
    %c0_i32 = arith.constant 0 : i32
    %c0_i32_0 = arith.constant 0 : i32
    return %arg0, %c0_i32 : i32, i32
  }
  func.func @transform_1(%arg0: i32) -> (i32, i32) {
    %c0_i32 = arith.constant 0 : i32
    %c0_i32_0 = arith.constant 0 : i32
    %c0_i32_1 = arith.constant 0 : i32
    return %c0_i32, %c0_i32_0 : i32, i32
  }
  func.func @transform_2(%arg0: i32) -> (i32, i32) {
    %c0_i32 = arith.constant 0 : i32
    %c0_i32_0 = arith.constant 0 : i32
    return %arg0, %c0_i32 : i32, i32
  }
}

</mosaic_0001>

<llo_original>
// kernel: tpu_custom_call.1
$region0: #{tpu_custom_call.1}
  #allocation0 [shape = 'u32[]', space=smem, size = 0x4, offset = 0x4, fixed_abs, tag = 'smem constant byte address 0x4 - core index']
  #allocation1 [shape = 'u32[144,128]{1,0:T(1,128)}', space=vmem, size = 0x12000, scoped, tag = 'internal scratch']
  %s0 = inlined_call_operand.vmem [shape: f32[8,32], index: 0, kind: input, shape index: {}]
  %s1 = inlined_call_operand.vmem [shape: f32[120,32], index: 1, kind: input, shape index: {}]
  %s2 = inlined_call_operand.hbm [shape: f32[8,8], index: 2, kind: output, shape index: {}]
  %s3 = sld [smem:[#allocation0]]
  $region18: #{tpu_custom_call.1} parent=0
    _
  %s5 = ssub.s32 1, %s3
  %s6 = scalar_select 0, %s5, %s3
  $region1: #{tpu_custom_call.1} parent=0
    #allocation2 [shape = 'u8[4096]{0}', space=vmem, size = 0x1000, scoped, tag = 'output window, operand 0, single buffered']
    #allocation3 [shape = 's32[1]{0}', space=sflag, size = 0x4, scoped, tag = 'scoped memory for tpu_custom_call.1']
    %7 = vsyncpa [#allocation3], 0
    // Predicated region
    $region2: #{tpu_custom_call.1} parent=1 // pred_check
      _
    $region3: #{tpu_custom_call.1} parent=1 // pred_check_branch
      %9 = sbr.rel (0) target = $region5
    $region4: #{tpu_custom_call.1} parent=1 // pred_region
      _
    $region5: #{tpu_custom_call.1} parent=1 // pred_fallthru
      _
    // Predicated region
    $region6: #{tpu_custom_call.1} parent=1 // pred_check
      _
    $region7: #{tpu_custom_call.1} parent=1 // pred_check_branch
      %11 = sbr.rel (0) target = $region9
    $region8: #{tpu_custom_call.1} parent=1 // pred_region
      _
    $region9: #{tpu_custom_call.1} parent=1 // pred_fallthru
      _
    %v12 = vld [vmem:[%s0] sm:$0xff]
    %v13 = vld [vmem:[%s1] sm:$0xff]
    %v14 = vld [vmem:[%s1 + $0x8] sm:$0xff]
    %v15 = vld [vmem:[%s1 + $0x10] sm:$0xff]
    %v16 = vld [vmem:[%s1 + $0x18] sm:$0xff]
    %v17 = vld [vmem:[%s1 + $0x20] sm:$0x1]
    %v18 = vlaneseq
    %v19 = vshrl.u32 %v18, 7
    %v20 = vsub.s32 0, %v19
    %v21 = vrot.slane %v17, %v20
    %vm22 = vcmask 261120
    %v24 = vsel %vm22, %v12, 0
    %26 = vmatprep.subr.mxu0 0.0
    %27 = vmatpush1.msra.mxu0 %v13
    %28 = vmatprep.subr.mxu0 0.0
    %29 = vmatpush1.msra.mxu0 %v14
    %30 = vmatprep.subr.mxu0 0.0
    %31 = vmatpush1.msra.mxu0 %v15
    %32 = vmatprep.subr.mxu0 0.0
    %33 = vmatpush1.msra.mxu0 %v16
    %34 = vmatprep.subr.mxu0 0.0
    %35 = vmatpush1.msra.mxu0 0.0
    %36 = vmatprep.subr.mxu0 0.0
    %37 = vmatpush1.msra.mxu0 0.0
    %38 = vmatprep.subr.mxu0 0.0
    %39 = vmatpush1.msra.mxu0 0.0
    %40 = vmatprep.subr.mxu0 0.0
    %41 = vmatpush1.msra.mxu0 0.0
    %42 = vmatprep.subr.mxu0 0.0
    %43 = vmatpush1.msra.mxu0 0.0
    %44 = vmatprep.subr.mxu0 0.0
    %45 = vmatpush1.msra.mxu0 0.0
    %46 = vmatprep.subr.mxu0 0.0
    %47 = vmatpush1.msra.mxu0 0.0
    %48 = vmatprep.subr.mxu0 0.0
    %49 = vmatpush1.msra.mxu0 0.0
    %50 = vmatprep.subr.mxu0 0.0
    %51 = vmatpush1.msra.mxu0 0.0
    %52 = vmatprep.subr.mxu0 0.0
    %53 = vmatpush1.msra.mxu0 0.0
    %54 = vmatprep.subr.mxu0 0.0
    %55 = vmatpush1.msra.mxu0 0.0
    %56 = vmatprep.subr.mxu0 0.0
    %57 = vmatpush1.msra.mxu0 0.0
    %58 = vmatprep.subr.mxu0 0.0
    %59 = vmatpush1.msra.mxu0 0.0
    %60 = vmatprep.subr.mxu0 0.0
    %61 = vmatpush1.msra.mxu0 0.0
    %62 = vmatprep.subr.mxu0 0.0
    %63 = vmatpush1.msra.mxu0 0.0
    %64 = vmatprep.subr.mxu0 0.0
    %65 = vmatpush1.msra.mxu0 0.0
    %66 = vmatprep.subr.mxu0 0.0
    %67 = vmatpush1.msra.mxu0 0.0
    %68 = vmatprep.subr.mxu0 0.0
    %69 = vmatpush1.msra.mxu0 0.0
    %70 = vmatprep.subr.mxu0 0.0
    %71 = vmatpush1.msra.mxu0 0.0
    %72 = vmatprep.subr.mxu0 0.0
    %73 = vmatpush1.msra.mxu0 0.0
    %74 = vmatprep.subr.mxu0 0.0
    %75 = vmatpush1.msra.mxu0 0.0
    %76 = vmatprep.subr.mxu0 0.0
    %77 = vmatpush1.msra.mxu0 0.0
    %78 = vmatprep.subr.mxu0 0.0
    %79 = vmatpush1.msra.mxu0 0.0
    %80 = vmatprep.subr.mxu0 0.0
    %81 = vmatpush1.msra.mxu0 0.0
    %82 = vmatprep.subr.mxu0 0.0
    %83 = vmatpush1.msra.mxu0 0.0
    %84 = vmatprep.subr.mxu0 0.0
    %85 = vmatpush1.msra.mxu0 0.0
    %86 = vmatprep.subr.mxu0 0.0
    %87 = vmatpush1.msra.mxu0 0.0
    %88 = vmatprep.subr.mxu0 0.0
    %89 = vmatpush1.msra.mxu0 0.0
    %90 = vmatprep.mubr.f32.mxu0 0.0
    %91 = vmatmul.mubr.f32.gmra.mrb[0].mxu0 %v24
    %v92 = vpop.f32.mrb[0].mxu0
    %v93 = vadd.f32 %v21, %v92
    %v94 = vpop.f32.mrb[0].mxu0
    %95 = vdwg.mxu0
    %v96 = vmax.f32 %v93, 0.0
    %v97 = vld [vmem:[%s1 + $0x28] sm:$0xff]
    %v98 = vld [vmem:[%s1 + $0x30] sm:$0xff]
    %v99 = vld [vmem:[%s1 + $0x38] sm:$0xff]
    %v100 = vld [vmem:[%s1 + $0x40] sm:$0xff]
    %v101 = vld [vmem:[%s1 + $0x48] sm:$0x1]
    %v102 = vlaneseq
    %v103 = vshrl.u32 %v102, 7
    %v104 = vsub.s32 0, %v103
    %v105 = vrot.slane %v101, %v104
    %v107 = vsel %vm22, %v96, 0
    %109 = vmatprep.subr.mxu0 0.0
    %110 = vmatpush1.msra.mxu0 %v97
    %111 = vmatprep.subr.mxu0 0.0
    %112 = vmatpush1.msra.mxu0 %v98
    %113 = vmatprep.subr.mxu0 0.0
    %114 = vmatpush1.msra.mxu0 %v99
    %115 = vmatprep.subr.mxu0 0.0
    %116 = vmatpush1.msra.mxu0 %v100
    %117 = vmatprep.subr.mxu0 0.0
    %118 = vmatpush1.msra.mxu0 0.0
    %119 = vmatprep.subr.mxu0 0.0
    %120 = vmatpush1.msra.mxu0 0.0
    %121 = vmatprep.subr.mxu0 0.0
    %122 = vmatpush1.msra.mxu0 0.0
    %123 = vmatprep.subr.mxu0 0.0
    %124 = vmatpush1.msra.mxu0 0.0
    %125 = vmatprep.subr.mxu0 0.0
    %126 = vmatpush1.msra.mxu0 0.0
    %127 = vmatprep.subr.mxu0 0.0
    %128 = vmatpush1.msra.mxu0 0.0
    %129 = vmatprep.subr.mxu0 0.0
    %130 = vmatpush1.msra.mxu0 0.0
    %131 = vmatprep.subr.mxu0 0.0
    %132 = vmatpush1.msra.mxu0 0.0
    %133 = vmatprep.subr.mxu0 0.0
    %134 = vmatpush1.msra.mxu0 0.0
    %135 = vmatprep.subr.mxu0 0.0
    %136 = vmatpush1.msra.mxu0 0.0
    %137 = vmatprep.subr.mxu0 0.0
    %138 = vmatpush1.msra.mxu0 0.0
    %139 = vmatprep.subr.mxu0 0.0
    %140 = vmatpush1.msra.mxu0 0.0
    %141 = vmatprep.subr.mxu0 0.0
    %142 = vmatpush1.msra.mxu0 0.0
    %143 = vmatprep.subr.mxu0 0.0
    %144 = vmatpush1.msra.mxu0 0.0
    %145 = vmatprep.subr.mxu0 0.0
    %146 = vmatpush1.msra.mxu0 0.0
    %147 = vmatprep.subr.mxu0 0.0
    %148 = vmatpush1.msra.mxu0 0.0
    %149 = vmatprep.subr.mxu0 0.0
    %150 = vmatpush1.msra.mxu0 0.0
    %151 = vmatprep.subr.mxu0 0.0
    %152 = vmatpush1.msra.mxu0 0.0
    %153 = vmatprep.subr.mxu0 0.0
    %154 = vmatpush1.msra.mxu0 0.0
    %155 = vmatprep.subr.mxu0 0.0
    %156 = vmatpush1.msra.mxu0 0.0
    %157 = vmatprep.subr.mxu0 0.0
    %158 = vmatpush1.msra.mxu0 0.0
    %159 = vmatprep.subr.mxu0 0.0
    %160 = vmatpush1.msra.mxu0 0.0
    %161 = vmatprep.subr.mxu0 0.0
    %162 = vmatpush1.msra.mxu0 0.0
    %163 = vmatprep.subr.mxu0 0.0
    %164 = vmatpush1.msra.mxu0 0.0
    %165 = vmatprep.subr.mxu0 0.0
    %166 = vmatpush1.msra.mxu0 0.0
    %167 = vmatprep.subr.mxu0 0.0
    %168 = vmatpush1.msra.mxu0 0.0
    %169 = vmatprep.subr.mxu0 0.0
    %170 = vmatpush1.msra.mxu0 0.0
    %171 = vmatprep.subr.mxu0 0.0
    %172 = vmatpush1.msra.mxu0 0.0
    %173 = vmatprep.mubr.f32.mxu0 0.0
    %174 = vmatmul.mubr.f32.gmra.mrb[0].mxu0 %v107
    %v175 = vpop.f32.mrb[0].mxu0
    %v176 = vadd.f32 %v105, %v175
    %v177 = vpop.f32.mrb[0].mxu0
    %178 = vdwg.mxu0
    %v179 = vmax.f32 %v176, 0.0
    %v180 = vld [vmem:[%s1 + $0x50] sm:$0xff]
    %v181 = vld [vmem:[%s1 + $0x58] sm:$0xff]
    %v182 = vld [vmem:[%s1 + $0x60] sm:$0xff]
    %v183 = vld [vmem:[%s1 + $0x68] sm:$0xff]
    %v184 = vld [vmem:[%s1 + $0x70] sm:$0x1]
    %v185 = vlaneseq
    %v186 = vshrl.u32 %v185, 7
    %v187 = vsub.s32 0, %v186
    %v188 = vrot.slane %v184, %v187
    %v190 = vsel %vm22, %v179, 0
    %192 = vmatprep.subr.mxu0 0.0
    %193 = vmatpush1.msra.mxu0 %v180
    %194 = vmatprep.subr.mxu0 0.0
    %195 = vmatpush1.msra.mxu0 %v181
    %196 = vmatprep.subr.mxu0 0.0
    %197 = vmatpush1.msra.mxu0 %v182
    %198 = vmatprep.subr.mxu0 0.0
    %199 = vmatpush1.msra.mxu0 %v183
    %200 = vmatprep.subr.mxu0 0.0
    %201 = vmatpush1.msra.mxu0 0.0
    %202 = vmatprep.subr.mxu0 0.0
    %203 = vmatpush1.msra.mxu0 0.0
    %204 = vmatprep.subr.mxu0 0.0
    %205 = vmatpush1.msra.mxu0 0.0
    %206 = vmatprep.subr.mxu0 0.0
    %207 = vmatpush1.msra.mxu0 0.0
    %208 = vmatprep.subr.mxu0 0.0
    %209 = vmatpush1.msra.mxu0 0.0
    %210 = vmatprep.subr.mxu0 0.0
    %211 = vmatpush1.msra.mxu0 0.0
    %212 = vmatprep.subr.mxu0 0.0
    %213 = vmatpush1.msra.mxu0 0.0
    %214 = vmatprep.subr.mxu0 0.0
    %215 = vmatpush1.msra.mxu0 0.0
    %216 = vmatprep.subr.mxu0 0.0
    %217 = vmatpush1.msra.mxu0 0.0
    %218 = vmatprep.subr.mxu0 0.0
    %219 = vmatpush1.msra.mxu0 0.0
    %220 = vmatprep.subr.mxu0 0.0
    %221 = vmatpush1.msra.mxu0 0.0
    %222 = vmatprep.subr.mxu0 0.0
    %223 = vmatpush1.msra.mxu0 0.0
    %224 = vmatprep.subr.mxu0 0.0
    %225 = vmatpush1.msra.mxu0 0.0
    %226 = vmatprep.subr.mxu0 0.0
    %227 = vmatpush1.msra.mxu0 0.0
    %228 = vmatprep.subr.mxu0 0.0
    %229 = vmatpush1.msra.mxu0 0.0
    %230 = vmatprep.subr.mxu0 0.0
    %231 = vmatpush1.msra.mxu0 0.0
    %232 = vmatprep.subr.mxu0 0.0
    %233 = vmatpush1.msra.mxu0 0.0
    %234 = vmatprep.subr.mxu0 0.0
    %235 = vmatpush1.msra.mxu0 0.0
    %236 = vmatprep.subr.mxu0 0.0
    %237 = vmatpush1.msra.mxu0 0.0
    %238 = vmatprep.subr.mxu0 0.0
    %239 = vmatpush1.msra.mxu0 0.0
    %240 = vmatprep.subr.mxu0 0.0
    %241 = vmatpush1.msra.mxu0 0.0
    %242 = vmatprep.subr.mxu0 0.0
    %243 = vmatpush1.msra.mxu0 0.0
    %244 = vmatprep.subr.mxu0 0.0
    %245 = vmatpush1.msra.mxu0 0.0
    %246 = vmatprep.subr.mxu0 0.0
    %247 = vmatpush1.msra.mxu0 0.0
    %248 = vmatprep.subr.mxu0 0.0
    %249 = vmatpush1.msra.mxu0 0.0
    %250 = vmatprep.subr.mxu0 0.0
    %251 = vmatpush1.msra.mxu0 0.0
    %252 = vmatprep.subr.mxu0 0.0
    %253 = vmatpush1.msra.mxu0 0.0
    %254 = vmatprep.subr.mxu0 0.0
    %255 = vmatpush1.msra.mxu0 0.0
    %256 = vmatprep.mubr.f32.mxu0 0.0
    %257 = vmatmul.mubr.f32.gmra.mrb[0].mxu0 %v190
    %v258 = vpop.f32.mrb[0].mxu0
    %v259 = vadd.f32 %v188, %v258
    %v260 = vpop.f32.mrb[0].mxu0
    %261 = vdwg.mxu0
    %vm262 = vcmask 64512
    %263 = vst.msk [vmem:[#allocation2] sm:$0xff] %vm262, %v259
    // Predicated region
    $region10: #{tpu_custom_call.1} parent=1 // pred_check
      _
    $region11: #{tpu_custom_call.1} parent=1 // pred_check_branch
      %265 = sbr.rel (0) target = $region13
    $region12: #{tpu_custom_call.1} parent=1 // pred_region
      %s267 = ssub.s32 128, 128
      %268 = vsyncadd [#allocation3], %s267
      %s270 = sshll.u32 [#allocation2], 4
      %s271 = int_to_ptr.vmem [resolvable:$true] %s270
      %273 = dma.vmem_to_hbm [thread:$0]  %s271, 128, %s2, [#allocation3]
    $region13: #{tpu_custom_call.1} parent=1 // pred_fallthru
      _
    // Predicated region
    $region14: #{tpu_custom_call.1} parent=1 // pred_check
      _
    $region15: #{tpu_custom_call.1} parent=1 // pred_check_branch
      %275 = sbr.rel (0) target = $region17
    $region16: #{tpu_custom_call.1} parent=1 // pred_region
      %276 = dma.done [#allocation3], 128
    $region17: #{tpu_custom_call.1} parent=1 // pred_fallthru
      _
    %277 = vsyncpa [#allocation3], 1

</llo_original>
